<compile_context>
chip_gen: v7x
topology: tpu7x:2x2x1
jax: 0.10.0
libtpu: 0.0.40
codegen_flags: <defaults>
</compile_context>

<pallas_src>
import functools

import jax
import jax.numpy as jnp
from jax.experimental import pallas as pl
from jax.experimental.pallas import tpu as pltpu


def _conv_bn_hswish_kernel(w_ref, shift_ref, x_ref, o_ref):
    # w_ref:     (Cc, in_c)   -- 1x1 conv weight with BN scale pre-folded
    # shift_ref: (Cc, 1)      -- folded BN shift (f32)
    # x_ref:     (in_c, ts)   -- spatial-on-lanes input tile
    # o_ref:     (Cc, ts)     -- lane-dense output tile
    y = jnp.dot(w_ref[...], x_ref[...], preferred_element_type=jnp.float32)
    y = y + shift_ref[...]
    # Hardswish: y * relu6(y + 3) / 6   (f32 epilogue; cast only at the store)
    o_ref[...] = (y * jnp.clip(y + 3.0, 0.0, 6.0) * (1.0 / 6.0)).astype(o_ref.dtype)


def _round_up(a, b):
    return (a + b - 1) // b * b


def _choose_tile(S, max_tile=2048):
    """Pick a spatial tile (multiple of 128, <= max_tile).

    Cost model per candidate t: n_steps * max(t, 1024) "lanes".
      - max(t, 1024) approximates per-grid-step cost (fixed ~0.35us overhead vs DMA time),
      - n_steps * t captures total HBM traffic including padding waste.
    Prefers the largest tile on ties (fewer steps at equal traffic).
    """
    S128 = _round_up(max(S, 1), 128)
    hi = min(max_tile, S128)
    best_t, best_cost = 128, None
    for t in range(128, hi + 1, 128):
        n = -(-S // t)
        cost = n * max(t, 1024)
        if best_cost is None or cost <= best_cost:
            best_t, best_cost = t, cost
    return best_t


def _fused_conv_bn_hswish(x_ncs, w_folded, shift, *, tile):
    # x_ncs: (N, in_c, S) with S % tile == 0; w_folded: (Cc, in_c); shift: (Cc, 1)
    N, in_c, S = x_ncs.shape
    Cc = w_folded.shape[0]
    assert S % tile == 0
    grid = (N, S // tile)
    return pl.pallas_call(
        _conv_bn_hswish_kernel,
        out_shape=jax.ShapeDtypeStruct((N, Cc, S), x_ncs.dtype),
        grid=grid,
        in_specs=[
            pl.BlockSpec((Cc, in_c), lambda n, s: (0, 0)),
            pl.BlockSpec((Cc, 1), lambda n, s: (0, 0)),
            pl.BlockSpec((None, in_c, tile), lambda n, s: (n, 0, s)),
        ],
        out_specs=pl.BlockSpec((None, Cc, tile), lambda n, s: (n, 0, s)),
        compiler_params=pltpu.CompilerParams(
            dimension_semantics=("parallel", "parallel")),
    )(w_folded, shift, x_ncs)


def pixel_shuffle_block(x_nchw, conv_w, bn_gamma, bn_beta, bn_mean, bn_var,
                        *, upscale_factor=2, eps=1e-5, max_tile=2048):
    """Forward pass of PixelShuffleBlock.

    x_nchw : (N, in_c, H, W)
    conv_w : (out_c * r^2, in_c, 1, 1)   (PyTorch Conv2d weight layout, bias=False)
    bn_*   : (out_c,)                    BatchNorm2d params / running stats
    Returns: (N, out_c, H*r, W*r)
    """
    r = upscale_factor
    N, in_c, H, W = x_nchw.shape
    Cc = conv_w.shape[0]
    out_c = Cc // (r * r)
    S = H * W

    # ---- parameter folding (plain JAX, tiny tensors) ----
    # Eval-mode BN folded into per-channel scale/shift; conv output channel j maps to BN channel
    # j // r^2 after pixel shuffle (PyTorch PixelShuffle semantics: j = c*r^2 + dy*r + dx).
    scale = bn_gamma * jax.lax.rsqrt(bn_var + eps)                   # (out_c,)
    shift = bn_beta - bn_mean * scale                                # (out_c,)
    scale_cc = jnp.repeat(scale, r * r)                              # (Cc,)
    shift_cc = jnp.repeat(shift, r * r).reshape(Cc, 1).astype(jnp.float32)
    w_folded = (conv_w[:, :, 0, 0].astype(jnp.float32)
                * scale_cc[:, None]).astype(x_nchw.dtype)            # (Cc, in_c)
    # TODO(synk): training-mode BatchNorm (batch statistics + stat updates) not implemented;
    #             eval-mode (running stats) only.

    # ---- input layout: NCHW is already spatial-contiguous; only a free reshape ----
    x_ncs = x_nchw.reshape(N, in_c, S)
    tile = _choose_tile(S, max_tile=max_tile)
    S_pad = _round_up(S, tile)
    if S_pad != S:
        # Minimal zero padding (tile chooser bounds the waste); sliced off after the kernel.
        x_ncs = jnp.pad(x_ncs, ((0, 0), (0, 0), (0, S_pad - S)))

    # ---- hot path: fused 1x1 conv + BN + Hardswish, lane-dense output ----
    y = _fused_conv_bn_hswish(x_ncs, w_folded, shift_cc, tile=tile)  # (N, Cc, S_pad)
    if S_pad != S:
        y = y[:, :, :S]

    # ---- pixel shuffle: (N, Cc, S) reshapes for free to (N, out_c, r, r, H, W); a single
    #      XLA transpose pass produces the final NCHW output. ----
    y = y.reshape(N, out_c, r, r, H, W)
    y = jnp.transpose(y, (0, 1, 4, 2, 5, 3))
    return y.reshape(N, out_c, H * r, W * r)


def _reference(x_nchw, conv_w, bn_gamma, bn_beta, bn_mean, bn_var,
               *, upscale_factor=2, eps=1e-5):
    """Pure-JAX reference mirroring the PyTorch forward (BN in eval mode)."""
    r = upscale_factor
    N, in_c, H, W = x_nchw.shape
    Cc = conv_w.shape[0]
    out_c = Cc // (r * r)
    # 1x1 conv, no bias
    y = jnp.einsum('nchw,oc->nohw', x_nchw, conv_w[:, :, 0, 0])
    # pixel shuffle
    y = y.reshape(N, out_c, r, r, H, W)
    y = jnp.transpose(y, (0, 1, 4, 2, 5, 3)).reshape(N, out_c, H * r, W * r)
    # batchnorm (eval)
    scale = bn_gamma * jax.lax.rsqrt(bn_var + eps)
    shift = bn_beta - bn_mean * scale
    y = y * scale[None, :, None, None] + shift[None, :, None, None]
    # hardswish
    return y * jnp.clip(y + 3.0, 0.0, 6.0) / 6.0


if __name__ == "__main__":
    # Small shapes consistent with the module: batch=2, in_c=16, out_c=8, r=2, 16x16 spatial.
    N, in_c, out_c, r, H, W = 2, 16, 8, 2, 16, 16
    Cc = out_c * r * r

    key = jax.random.PRNGKey(0)
    k_x, k_w, k_g, k_b, k_m, k_v = jax.random.split(key, 6)

    x = jax.random.normal(k_x, (N, in_c, H, W), dtype=jnp.float32)
    conv_w = jax.random.normal(k_w, (Cc, in_c, 1, 1), dtype=jnp.float32) * 0.1
    bn_gamma = 1.0 + 0.1 * jax.random.normal(k_g, (out_c,), dtype=jnp.float32)
    bn_beta = 0.1 * jax.random.normal(k_b, (out_c,), dtype=jnp.float32)
    bn_mean = 0.05 * jax.random.normal(k_m, (out_c,), dtype=jnp.float32)
    bn_var = jnp.abs(1.0 + 0.1 * jax.random.normal(k_v, (out_c,), dtype=jnp.float32))

    fwd = jax.jit(functools.partial(pixel_shuffle_block, upscale_factor=r))
    out = fwd(x, conv_w, bn_gamma, bn_beta, bn_mean, bn_var)
    out = jax.block_until_ready(out)

    ref = _reference(x, conv_w, bn_gamma, bn_beta, bn_mean, bn_var, upscale_factor=r)
    assert out.shape == (N, out_c, H * r, W * r), out.shape
    assert jnp.allclose(out, ref, atol=1e-4, rtol=1e-4), "mismatch vs reference"

    print("KERNEL_OK")
</pallas_src>

<mosaic_0001>
module attributes {stable_mosaic.version = 11 : i64} {
  func.func @_conv_bn_hswish_kernel(%arg0: i32, %arg1: i32, %arg2: memref<32x16xf32, #tpu.memory_space<vmem>>, %arg3: memref<32x1xf32, #tpu.memory_space<vmem>>, %arg4: memref<1x16x256xf32, #tpu.memory_space<vmem>>, %arg5: memref<1x32x256xf32, #tpu.memory_space<vmem>>) attributes {dimension_semantics = [#tpu.dimension_semantics<parallel>, #tpu.dimension_semantics<parallel>], iteration_bounds = array<i64: 2, 1>, scalar_prefetch = 0 : i64, scratch_operands = 0 : i64, tpu.core_type = #tpu.core_type<tc>, window_params = [{pipeline_mode = #tpu.pipeline_mode<synchronous>, transform_indices = @transform_0, window_bounds = array<i64: 32, 16>}, {pipeline_mode = #tpu.pipeline_mode<synchronous>, transform_indices = @transform_1, window_bounds = array<i64: 32, 1>}, {transform_indices = @transform_2, window_bounds = array<i64: 1, 16, 256>}, {transform_indices = @transform_3, window_bounds = array<i64: 1, 32, 256>}]} {
    %c0 = arith.constant 0 : index
    %c0_0 = arith.constant 0 : index
    %0 = vector.load %arg2[%c0, %c0_0] : memref<32x16xf32, #tpu.memory_space<vmem>>, vector<32x16xf32>
    %c0_1 = arith.constant 0 : index
    %c0_2 = arith.constant 0 : index
    %c0_3 = arith.constant 0 : index
    %1 = vector.load %arg4[%c0_1, %c0_2, %c0_3] : memref<1x16x256xf32, #tpu.memory_space<vmem>>, vector<1x16x256xf32>
    %2 = vector.shape_cast %1 : vector<1x16x256xf32> to vector<16x256xf32>
    %cst = arith.constant dense<0.000000e+00> : vector<32x256xf32>
    %3 = tpu.matmul %0, %2, %cst {dimension_numbers = #tpu.dot_dimension_numbers<[1], [0], [0], [1], [0, 0, 1, 1], [], []>} : vector<32x16xf32>, vector<16x256xf32>, vector<32x256xf32> -> vector<32x256xf32>
    %c0_4 = arith.constant 0 : index
    %c0_5 = arith.constant 0 : index
    %4 = vector.load %arg3[%c0_4, %c0_5] : memref<32x1xf32, #tpu.memory_space<vmem>>, vector<32x1xf32>
    %5 = vector.broadcast %4 : vector<32x1xf32> to vector<32x256xf32>
    %6 = arith.addf %3, %5 : vector<32x256xf32>
    %cst_6 = arith.constant 3.000000e+00 : f32
    %7 = vector.broadcast %cst_6 : f32 to vector<32x256xf32>
    %8 = arith.addf %6, %7 : vector<32x256xf32>
    %cst_7 = arith.constant 0.000000e+00 : f32
    %cst_8 = arith.constant 6.000000e+00 : f32
    %9 = vector.broadcast %cst_7 : f32 to vector<32x256xf32>
    %10 = arith.maximumf %9, %8 : vector<32x256xf32>
    %11 = vector.broadcast %cst_8 : f32 to vector<32x256xf32>
    %12 = arith.minimumf %11, %10 : vector<32x256xf32>
    %13 = arith.mulf %6, %12 : vector<32x256xf32>
    %cst_9 = arith.constant 0.166666672 : f32
    %14 = vector.broadcast %cst_9 : f32 to vector<32x256xf32>
    %15 = arith.mulf %13, %14 : vector<32x256xf32>
    %c0_10 = arith.constant 0 : index
    %c0_11 = arith.constant 0 : index
    %c0_12 = arith.constant 0 : index
    %16 = vector.load %arg5[%c0_10, %c0_11, %c0_12] : memref<1x32x256xf32, #tpu.memory_space<vmem>>, vector<1x32x256xf32>
    %17 = vector.shape_cast %16 : vector<1x32x256xf32> to vector<32x256xf32>
    %18 = vector.shape_cast %15 : vector<32x256xf32> to vector<1x32x256xf32>
    tpu.vector_store %arg5[%c0_10, %c0_11, %c0_12], %18 {strides = array<i32>} : memref<1x32x256xf32, #tpu.memory_space<vmem>>, vector<1x32x256xf32>,
    return
  }
  func.func @transform_0(%arg0: i32, %arg1: i32) -> (i32, i32) {
    %c0_i32 = arith.constant 0 : i32
    %c0_i32_0 = arith.constant 0 : i32
    %c0_i32_1 = arith.constant 0 : i32
    return %c0_i32, %c0_i32_0 : i32, i32
  }
  func.func @transform_1(%arg0: i32, %arg1: i32) -> (i32, i32) {
    %c0_i32 = arith.constant 0 : i32
    %c0_i32_0 = arith.constant 0 : i32
    %c0_i32_1 = arith.constant 0 : i32
    return %c0_i32, %c0_i32_0 : i32, i32
  }
  func.func @transform_2(%arg0: i32, %arg1: i32) -> (i32, i32, i32) {
    %c0_i32 = arith.constant 0 : i32
    %c0_i32_0 = arith.constant 0 : i32
    return %arg0, %c0_i32, %arg1 : i32, i32, i32
  }
  func.func @transform_3(%arg0: i32, %arg1: i32) -> (i32, i32, i32) {
    %c0_i32 = arith.constant 0 : i32
    %c0_i32_0 = arith.constant 0 : i32
    return %arg0, %c0_i32, %arg1 : i32, i32, i32
  }
}

</mosaic_0001>

<llo_original>
// kernel: mul.9
$region0: #{mul.9}
  %s0 = inlined_call_operand.vmem [shape: f32[8,4], index: 0, kind: input, shape index: {}]
  %s1 = inlined_call_operand.vmem [shape: f32[32], index: 1, kind: output, shape index: {}]
  $region1: #{mul.9} parent=0
    #allocation0 [shape = 'u8[4096]{0}', space=vmem, size = 0x1000, scoped, tag = 'scoped mem for output reshape']
    %v2 = vld [vmem:[%s0] sm:$0x1]
    %vm3 = vcmask 31744
    %4 = vst.msk [vmem:[#allocation0] sm:$0x1] %vm3, %v2
    %s5 = scalar_lea.vmem %s0, 7
    %v6 = vld [vmem:[%s5] sm:$0x1]
    %7 = vrot.lane.b32.xlu0 %v6, 28
    %v8 = vpop.permute.xlu0 %7
    %vm9 = vcmask 261344
    %10 = vst.msk [vmem:[#allocation0] sm:$0x1] %vm9, %v8
    %s11 = scalar_lea.vmem %s0, 6
    %v12 = vld [vmem:[%s11] sm:$0x1]
    %13 = vrot.lane.b32.xlu0 %v12, 24
    %v14 = vpop.permute.xlu0 %13
    %vm15 = vcmask 228544
    %16 = vst.msk [vmem:[#allocation0] sm:$0x1] %vm15, %v14
    %s17 = scalar_lea.vmem %s0, 5
    %v18 = vld [vmem:[%s17] sm:$0x1]
    %19 = vrot.lane.b32.xlu0 %v18, 20
    %v20 = vpop.permute.xlu0 %19
    %vm21 = vcmask 195744
    %22 = vst.msk [vmem:[#allocation0] sm:$0x1] %vm21, %v20
    %s23 = scalar_lea.vmem %s0, 4
    %v24 = vld [vmem:[%s23] sm:$0x1]
    %25 = vrot.lane.b32.xlu0 %v24, 16
    %v26 = vpop.permute.xlu0 %25
    %vm27 = vcmask 162944
    %28 = vst.msk [vmem:[#allocation0] sm:$0x1] %vm27, %v26
    %s29 = scalar_lea.vmem %s0, 3
    %v30 = vld [vmem:[%s29] sm:$0x1]
    %31 = vrot.lane.b32.xlu0 %v30, 12
    %v32 = vpop.permute.xlu0 %31
    %vm33 = vcmask 130144
    %34 = vst.msk [vmem:[#allocation0] sm:$0x1] %vm33, %v32
    %s35 = scalar_lea.vmem %s0, 2
    %v36 = vld [vmem:[%s35] sm:$0x1]
    %37 = vrot.lane.b32.xlu0 %v36, 8
    %v38 = vpop.permute.xlu0 %37
    %vm39 = vcmask 97344
    %40 = vst.msk [vmem:[#allocation0] sm:$0x1] %vm39, %v38
    %s41 = scalar_lea.vmem %s0, 1
    %v42 = vld [vmem:[%s41] sm:$0x1]
    %43 = vrot.lane.b32.xlu0 %v42, 4
    %v44 = vpop.permute.xlu0 %43
    %vm45 = vcmask 64544
    %46 = vst.msk [vmem:[#allocation0] sm:$0x1] %vm45, %v44
    %s48 = sshllo.u32 0, 1
    %v50 = vld [vmem:[#allocation0] sm:%s48]
    %s51 = sshllo.u32 0, 1
    %52 = vst [vmem:[%s1] sm:%s51] %v50

// kernel: pixel_shuffle_block.1
$region0: #{pixel_shuffle_block.1}
  #allocation0 [shape = 'u32[]', space=smem, size = 0x4, offset = 0x4, fixed_abs, tag = 'smem constant byte address 0x4 - core index']
  #allocation1 [shape = 'u32[144,128]{1,0:T(1,128)}', space=vmem, size = 0x12000, scoped, tag = 'internal scratch']
  %s0 = inlined_call_operand.vmem [shape: f32[32,16], index: 0, kind: input, shape index: {}]
  %s1 = inlined_call_operand.vmem [shape: f32[32,1], index: 1, kind: input, shape index: {}]
  %s2 = inlined_call_operand.vmem [shape: f32[2,16,256], index: 2, kind: input, shape index: {}]
  %s3 = inlined_call_operand.vmem [shape: f32[2,32,256], index: 3, kind: output, shape index: {}]
  %s4 = sld [smem:[#allocation0]]
  $region45: #{pixel_shuffle_block.1} parent=0
    _
  %s6 = ssub.s32 1, %s4
  %s7 = scalar_select 0, %s6, %s4
  loop: start=0, step=1, limit=4
  $region2: #{pixel_shuffle_block.1} parent=0 // loop_pre_header
    _
  $region3: #{pixel_shuffle_block.1} parent=0 // loop_header
    %s9 = sphi 0, %s13
    %p10 = scmp.ge.s32.totalorder %s9, 4
    %s16 = sphi 0, %s28
    %s17 = sphi 0, %s24
    %s18 = sphi 0, %s16
    %s19 = sphi 0, %s17
    %s20 = sphi 0, %s18
    %s21 = sphi 0, %s19
    %s29 = sphi 0, %s29
    %s31 = sphi 0, %s29
    %s32 = sphi 0, %s31
    %s46 = sphi 0, %s32
    %s50 = sphi 0, %s50
    %s52 = sphi 0, %s50
    %s53 = sphi 0, %s52
    %s67 = sphi 0, %s53
    %s75 = sphi 0, %s77
    %s78 = sphi 0, %s75
    %s79 = sphi 0, %s78
    %s95 = sphi 0, %s79
    %s103 = sphi 0, %s105
    %s106 = sphi 0, %s103
    %s107 = sphi 0, %s106
    %s123 = sphi 0, %s107
  $region4: #{pixel_shuffle_block.1} parent=0 // loop_header_branch
    %12 = sbr.rel (%p10) target = $region8
  $region5: #{pixel_shuffle_block.1} parent=0 // loop_body
    %s14 = ssub.s32 %s9, 1
    %s15 = ssub.s32 %s9, 2
    %s22 = sadd.s32 1, %s17
    %p23 = scmp.ge.s32.totalorder %s22, 1
    %s24 = scalar_select %p23, 0, %s22
    %s25 = sadd.s32 1, %s16
    %s26 = scalar_select %p23, %s25, %s16
    %p27 = scmp.ge.s32.totalorder %s26, 2
    %s28 = scalar_select %p27, 0, %s26
    %s30 = sadd.s32 %s29, 1
    %p33 = scmp.eq.s32.totalorder %s9, 1
    %p34 = scmp.ne.s32.totalorder %s29, %s31
    %p35 = scmp.eq.s32.totalorder %s9, 0
    %p36 = por %p34, %p35
    %p37 = scmp.ne.s32.totalorder %s29, %s31
    %p38 = scmp.eq.s32.totalorder %s14, 1
    %p39 = por %p37, %p38
    %p40 = scmp.ne.s32.totalorder %s31, %s32
    %p41 = scmp.eq.s32.totalorder %s14, 0
    %p42 = por %p40, %p41
    %p43 = scmp.ne.s32.totalorder %s31, %s32
    %p44 = scmp.eq.s32.totalorder %s15, 1
    %p45 = por %p43, %p44
    %p47 = scmp.ne.s32.totalorder %s32, %s46
    %p48 = scmp.eq.s32.totalorder %s15, 0
    %p49 = por %p47, %p48
    %s51 = sadd.s32 %s50, 1
    %p54 = scmp.eq.s32.totalorder %s9, 1
    %p55 = scmp.ne.s32.totalorder %s50, %s52
    %p56 = scmp.eq.s32.totalorder %s9, 0
    %p57 = por %p55, %p56
    %p58 = scmp.ne.s32.totalorder %s50, %s52
    %p59 = scmp.eq.s32.totalorder %s14, 1
    %p60 = por %p58, %p59
    %p61 = scmp.ne.s32.totalorder %s52, %s53
    %p62 = scmp.eq.s32.totalorder %s14, 0
    %p63 = por %p61, %p62
    %p64 = scmp.ne.s32.totalorder %s52, %s53
    %p65 = scmp.eq.s32.totalorder %s15, 1
    %p66 = por %p64, %p65
    %p68 = scmp.ne.s32.totalorder %s53, %s67
    %p69 = scmp.eq.s32.totalorder %s15, 0
    %p70 = por %p68, %p69
    %s71 = ssub.s32 %s16, %s28
    %s72 = ssub.s32 %s17, %s24
    %s73 = sor.u32 %s71, %s72
    %p74 = scmp.eq.s32.totalorder %s73, 0
    %s76 = sadd.s32 %s75, 1
    %s77 = scalar_select %p74, %s75, %s76
    %p80 = pneg %p74
    %p81 = scmp.eq.s32.totalorder %s9, 1
    %p82 = por %p80, %p81
    %p83 = scmp.ne.s32.totalorder %s75, %s78
    %p84 = scmp.eq.s32.totalorder %s9, 0
    %p85 = por %p83, %p84
    %p86 = scmp.ne.s32.totalorder %s75, %s78
    %p87 = scmp.eq.s32.totalorder %s14, 1
    %p88 = por %p86, %p87
    %p89 = scmp.ne.s32.totalorder %s78, %s79
    %p90 = scmp.eq.s32.totalorder %s14, 0
    %p91 = por %p89, %p90
    %p92 = scmp.ne.s32.totalorder %s78, %s79
    %p93 = scmp.eq.s32.totalorder %s15, 1
    %p94 = por %p92, %p93
    %p96 = scmp.ne.s32.totalorder %s79, %s95
    %p97 = scmp.eq.s32.totalorder %s15, 0
    %p98 = por %p96, %p97
    %s99 = ssub.s32 %s16, %s28
    %s100 = ssub.s32 %s17, %s24
    %s101 = sor.u32 %s99, %s100
    %p102 = scmp.eq.s32.totalorder %s101, 0
    %s104 = sadd.s32 %s103, 1
    %s105 = scalar_select %p102, %s103, %s104
    %p108 = pneg %p102
    %p109 = scmp.eq.s32.totalorder %s9, 1
    %p110 = por %p108, %p109
    %p111 = scmp.ne.s32.totalorder %s103, %s106
    %p112 = scmp.eq.s32.totalorder %s9, 0
    %p113 = por %p111, %p112
    %p114 = scmp.ne.s32.totalorder %s103, %s106
    %p115 = scmp.eq.s32.totalorder %s14, 1
    %p116 = por %p114, %p115
    %p117 = scmp.ne.s32.totalorder %s106, %s107
    %p118 = scmp.eq.s32.totalorder %s14, 0
    %p119 = por %p117, %p118
    %p120 = scmp.ne.s32.totalorder %s106, %s107
    %p121 = scmp.eq.s32.totalorder %s15, 1
    %p122 = por %p120, %p121
    %p124 = scmp.ne.s32.totalorder %s107, %s123
    %p125 = scmp.eq.s32.totalorder %s15, 0
    %p126 = por %p124, %p125
    %p127 = scmp.le.s32.totalorder 1, %s9
    %p128 = scmp.lt.s32.totalorder %s9, 3
    %p129 = pnand %p127, %p128
    %p130 = pneg %p129
    // Predicated region
    $region9: #{pixel_shuffle_block.1} parent=5 // pred_check
      _
    $region10: #{pixel_shuffle_block.1} parent=5 // pred_check_branch
      %132 = sbr.rel (%p129) target = $region12
    $region11: #{pixel_shuffle_block.1} parent=5 // pred_region
      %s133 = ssub.s32 %s9, 1
      // Predicated region
      $region13: #{pixel_shuffle_block.1} parent=11 // pred_check
        %p134 = pneg %p42
      $region14: #{pixel_shuffle_block.1} parent=11 // pred_check_branch
        %136 = sbr.rel (%p134) target = $region16
      $region15: #{pixel_shuffle_block.1} parent=11 // pred_region
        _
      $region16: #{pixel_shuffle_block.1} parent=11 // pred_fallthru
        _
      // Predicated region
      $region17: #{pixel_shuffle_block.1} parent=11 // pred_check
        %p137 = pneg %p63
      $region18: #{pixel_shuffle_block.1} parent=11 // pred_check_branch
        %139 = sbr.rel (%p137) target = $region20
      $region19: #{pixel_shuffle_block.1} parent=11 // pred_region
        _
      $region20: #{pixel_shuffle_block.1} parent=11 // pred_fallthru
        _
    $region12: #{pixel_shuffle_block.1} parent=5 // pred_fallthru
      _
    %p140 = scmp.lt.s32.totalorder %s9, 2
    // Predicated region
    $region21: #{pixel_shuffle_block.1} parent=5 // pred_check
      %p141 = pneg %p140
    $region22: #{pixel_shuffle_block.1} parent=5 // pred_check_branch
      %143 = sbr.rel (%p141) target = $region24
    $region23: #{pixel_shuffle_block.1} parent=5 // pred_region
      // Predicated region
      $region25: #{pixel_shuffle_block.1} parent=23 // pred_check
        %p144 = pneg %p85
      $region26: #{pixel_shuffle_block.1} parent=23 // pred_check_branch
        %146 = sbr.rel (%p144) target = $region28
      $region27: #{pixel_shuffle_block.1} parent=23 // pred_region
        %s147 = smul.u32 2, %s17
        %p148 = scmp.lt.s32.totalorder %s16, 1
        %s149 = scalar_select %p148, %s16, 1
        %p150 = scmp.lt.s32.totalorder %s147, 1
        %s151 = scalar_select %p150, %s147, 1
        %s152 = smul.addr %s149, 4
        %s153 = sadd.s32 %s151, %s152
        %s154 = smul.addr %s153, 8
        %s155 = scalar_lea.vmem %s2, %s154
        %s156 = smul.u32 2, %s17
      $region28: #{pixel_shuffle_block.1} parent=23 // pred_fallthru
        _
    $region24: #{pixel_shuffle_block.1} parent=5 // pred_fallthru
      _
    %p157 = scmp.le.s32.totalorder 1, %s9
    %p158 = scmp.lt.s32.totalorder %s9, 3
    %p159 = pnand %p157, %p158
    %p160 = pneg %p159
    // Predicated region
    $region29: #{pixel_shuffle_block.1} parent=5 // pred_check
      _
    $region30: #{pixel_shuffle_block.1} parent=5 // pred_check_branch
      %162 = sbr.rel (%p159) target = $region32
    $region31: #{pixel_shuffle_block.1} parent=5 // pred_region
      %s163 = ssub.s32 %s9, 1
      %p164 = pneg %p42
      %p165 = pneg %p39
      %p166 = pneg %p63
      %p167 = pneg %p60
      %s168 = smul.u32 2, %s19
      %p169 = scmp.lt.s32.totalorder %s18, 1
      %s170 = scalar_select %p169, %s18, 1
      %p171 = scmp.lt.s32.totalorder %s168, 1
      %s172 = scalar_select %p171, %s168, 1
      %s173 = smul.addr %s170, 4
      %s174 = sadd.s32 %s172, %s173
      %s175 = smul.addr %s174, 8
      %s176 = scalar_lea.vmem %s2, %s175
      %p177 = pneg %p91
      %p178 = pneg %p88
      %p179 = pneg %p119
      %p180 = pneg %p116
      %s181 = smul.u32 2, %s19
      %p182 = scmp.lt.s32.totalorder %s18, 1
      %s183 = scalar_select %p182, %s18, 1
      %p184 = scmp.lt.s32.totalorder %s181, 1
      %s185 = scalar_select %p184, %s181, 1
      %s186 = smul.addr %s183, 8
      %s187 = sadd.s32 %s185, %s186
      %s188 = smul.addr %s187, 8
      %s189 = scalar_lea.vmem %s3, %s188
      %s190 = smul.u32 2, %s19
      %p191 = scmp.lt.s32.totalorder %s18, 1
      %s192 = scalar_select %p191, %s18, 1
      %p193 = scmp.lt.s32.totalorder %s190, 1
      %s194 = scalar_select %p193, %s190, 1
      %s195 = smul.addr %s192, 4
      %s196 = sadd.s32 %s194, %s195
      %s197 = smul.addr %s196, 8
      %s198 = scalar_lea.vmem %s2, %s197
      %s199 = smul.u32 2, %s19
      %s200 = smul.u32 2, %s19
      %p201 = scmp.lt.s32.totalorder %s18, 1
      %s202 = scalar_select %p201, %s18, 1
      %p203 = scmp.lt.s32.totalorder %s200, 1
      %s204 = scalar_select %p203, %s200, 1
      %s205 = smul.addr %s202, 8
      %s206 = sadd.s32 %s204, %s205
      %s207 = smul.addr %s206, 8
      %s208 = scalar_lea.vmem %s3, %s207
      %s209 = smul.u32 2, %s19
      %v210 = vld [vmem:[%s0] sm:$0xff]
      %v211 = vld [vmem:[%s0 + $0x8] sm:$0xff]
      %v212 = vld [vmem:[%s0 + $0x10] sm:$0xff]
      %v213 = vld [vmem:[%s0 + $0x18] sm:$0xff]
      %v214 = vld [vmem:[%s198] sm:$0xff]
      %v215 = vld [vmem:[%s198 + $0x8] sm:$0xff]
      %v216 = vld [vmem:[%s198 + $0x10] sm:$0xff]
      %v217 = vld [vmem:[%s198 + $0x18] sm:$0xff]
      %v218 = vld [vmem:[%s1] sm:$0xff]
      %v219 = vld [vmem:[%s1 + $0x8] sm:$0xff]
      %v220 = vld [vmem:[%s1 + $0x10] sm:$0xff]
      %v221 = vld [vmem:[%s1 + $0x18] sm:$0xff]
      %223 = vset.pattern.permute.xlu0 0
      %224 = vperm.xlu0 %223, %v218
      %v225 = vpop.permute.xlu0 %224
      %228 = vset.pattern.permute.xlu0 0
      %229 = vperm.xlu0 %228, %v219
      %v230 = vpop.permute.xlu0 %229
      %233 = vset.pattern.permute.xlu0 0
      %234 = vperm.xlu0 %233, %v220
      %v235 = vpop.permute.xlu0 %234
      %238 = vset.pattern.permute.xlu0 0
      %239 = vperm.xlu0 %238, %v221
      %v240 = vpop.permute.xlu0 %239
      %vm242 = vcmask 130048
      %v244 = vsel %vm242, %v210, 0
      %v247 = vsel %vm242, %v211, 0
      %v250 = vsel %vm242, %v212, 0
      %v253 = vsel %vm242, %v213, 0
      %255 = vmatprep.subr.mxu0 %v215
      %256 = vmatpush1.msra.mxu0 %v214
      %257 = vmatprep.subr.mxu0 %v217
      %258 = vmatpush1.msra.mxu0 %v216
      %259 = vmatprep.subr.mxu0 0.0
      %260 = vmatpush1.msra.mxu0 0.0
      %261 = vmatprep.subr.mxu0 0.0
      %262 = vmatpush1.msra.mxu0 0.0
      %263 = vmatprep.subr.mxu0 0.0
      %264 = vmatpush1.msra.mxu0 0.0
      %265 = vmatprep.subr.mxu0 0.0
      %266 = vmatpush1.msra.mxu0 0.0
      %267 = vmatprep.subr.mxu0 0.0
      %268 = vmatpush1.msra.mxu0 0.0
      %269 = vmatprep.subr.mxu0 0.0
      %270 = vmatpush1.msra.mxu0 0.0
      %271 = vmatprep.subr.mxu0 0.0
      %272 = vmatpush1.msra.mxu0 0.0
      %273 = vmatprep.subr.mxu0 0.0
      %274 = vmatpush1.msra.mxu0 0.0
      %275 = vmatprep.subr.mxu0 0.0
      %276 = vmatpush1.msra.mxu0 0.0
      %277 = vmatprep.subr.mxu0 0.0
      %278 = vmatpush1.msra.mxu0 0.0
      %279 = vmatprep.subr.mxu0 0.0
      %280 = vmatpush1.msra.mxu0 0.0
      %281 = vmatprep.subr.mxu0 0.0
      %282 = vmatpush1.msra.mxu0 0.0
      %283 = vmatprep.subr.mxu0 0.0
      %284 = vmatpush1.msra.mxu0 0.0
      %285 = vmatprep.subr.mxu0 0.0
      %286 = vmatpush1.msra.mxu0 0.0
      %287 = vmatprep.subr.mxu0 0.0
      %288 = vmatpush1.msra.mxu0 0.0
      %289 = vmatprep.subr.mxu0 0.0
      %290 = vmatpush1.msra.mxu0 0.0
      %291 = vmatprep.subr.mxu0 0.0
      %292 = vmatpush1.msra.mxu0 0.0
      %293 = vmatprep.subr.mxu0 0.0
      %294 = vmatpush1.msra.mxu0 0.0
      %295 = vmatprep.subr.mxu0 0.0
      %296 = vmatpush1.msra.mxu0 0.0
      %297 = vmatprep.subr.mxu0 0.0
      %298 = vmatpush1.msra.mxu0 0.0
      %299 = vmatprep.subr.mxu0 0.0
      %300 = vmatpush1.msra.mxu0 0.0
      %301 = vmatprep.subr.mxu0 0.0
      %302 = vmatpush1.msra.mxu0 0.0
      %303 = vmatprep.subr.mxu0 0.0
      %304 = vmatpush1.msra.mxu0 0.0
      %305 = vmatprep.subr.mxu0 0.0
      %306 = vmatpush1.msra.mxu0 0.0
      %307 = vmatprep.subr.mxu0 0.0
      %308 = vmatpush1.msra.mxu0 0.0
      %309 = vmatprep.subr.mxu0 0.0
      %310 = vmatpush1.msra.mxu0 0.0
      %311 = vmatprep.subr.mxu0 0.0
      %312 = vmatpush1.msra.mxu0 0.0
      %313 = vmatprep.subr.mxu0 0.0
      %314 = vmatpush1.msra.mxu0 0.0
      %315 = vmatprep.subr.mxu0 0.0
      %316 = vmatpush1.msra.mxu0 0.0
      %317 = vmatprep.subr.mxu0 0.0
      %318 = vmatpush1.msra.mxu0 0.0
      %319 = vmatprep.mubr.f32.mxu0 0.0
      %320 = vmatmul.mubr.f32.gmra.mrb[0].mxu0 %v244
      %v321 = vpop.f32.mrb[0].mxu0
      %v322 = vadd.f32 %v225, %v321
      %v323 = vpop.f32.mrb[0].mxu0
      %v324 = vadd.f32 %v225, %v323
      %325 = vmatprep.mubr.f32.mxu0 0.0
      %326 = vmatmul.mubr.f32.gmra.mrb[0].mxu0 %v247
      %v327 = vpop.f32.mrb[0].mxu0
      %v328 = vadd.f32 %v230, %v327
      %v329 = vpop.f32.mrb[0].mxu0
      %v330 = vadd.f32 %v230, %v329
      %331 = vmatprep.mubr.f32.mxu0 0.0
      %332 = vmatmul.mubr.f32.gmra.mrb[0].mxu0 %v250
      %v333 = vpop.f32.mrb[0].mxu0
      %v334 = vadd.f32 %v235, %v333
      %v335 = vpop.f32.mrb[0].mxu0
      %v336 = vadd.f32 %v235, %v335
      %337 = vmatprep.mubr.f32.mxu0 0.0
      %338 = vmatmul.mubr.f32.gmra.mrb[0].mxu0 %v253
      %v339 = vpop.f32.mrb[0].mxu0
      %v340 = vadd.f32 %v240, %v339
      %v341 = vpop.f32.mrb[0].mxu0
      %v342 = vadd.f32 %v240, %v341
      %343 = vdwg.mxu0
      %v344 = vadd.f32 %v322, 3.0
      %v345 = vadd.f32 %v324, 3.0
      %v346 = vadd.f32 %v328, 3.0
      %v347 = vadd.f32 %v330, 3.0
      %v348 = vadd.f32 %v334, 3.0
      %v349 = vadd.f32 %v336, 3.0
      %v350 = vadd.f32 %v340, 3.0
      %v351 = vadd.f32 %v342, 3.0
      %v352 = vmax.f32 %v344, 0.0
      %v353 = vmax.f32 %v345, 0.0
      %v354 = vmax.f32 %v346, 0.0
      %v355 = vmax.f32 %v347, 0.0
      %v356 = vmax.f32 %v348, 0.0
      %v357 = vmax.f32 %v349, 0.0
      %v358 = vmax.f32 %v350, 0.0
      %v359 = vmax.f32 %v351, 0.0
      %v360 = vmin.f32 %v352, 6.0
      %v361 = vmin.f32 %v353, 6.0
      %v362 = vmin.f32 %v354, 6.0
      %v363 = vmin.f32 %v355, 6.0
      %v364 = vmin.f32 %v356, 6.0
      %v365 = vmin.f32 %v357, 6.0
      %v366 = vmin.f32 %v358, 6.0
      %v367 = vmin.f32 %v359, 6.0
      %v368 = vmul.f32 %v322, %v360
      %v369 = vmul.f32 %v324, %v361
      %v370 = vmul.f32 %v328, %v362
      %v371 = vmul.f32 %v330, %v363
      %v372 = vmul.f32 %v334, %v364
      %v373 = vmul.f32 %v336, %v365
      %v374 = vmul.f32 %v340, %v366
      %v375 = vmul.f32 %v342, %v367
      %v376 = vmul.f32 %v368, 0.16666667
      %v377 = vmul.f32 %v369, 0.16666667
      %v378 = vmul.f32 %v370, 0.16666667
      %v379 = vmul.f32 %v371, 0.16666667
      %v380 = vmul.f32 %v372, 0.16666667
      %v381 = vmul.f32 %v373, 0.16666667
      %v382 = vmul.f32 %v374, 0.16666667
      %v383 = vmul.f32 %v375, 0.16666667
      %384 = vst [vmem:[%s208] sm:$0xff] %v376
      %385 = vst [vmem:[%s208 + $0x8] sm:$0xff] %v377
      %386 = vst [vmem:[%s208 + $0x10] sm:$0xff] %v378
      %387 = vst [vmem:[%s208 + $0x18] sm:$0xff] %v379
      %388 = vst [vmem:[%s208 + $0x20] sm:$0xff] %v380
      %389 = vst [vmem:[%s208 + $0x28] sm:$0xff] %v381
      %390 = vst [vmem:[%s208 + $0x30] sm:$0xff] %v382
      %391 = vst [vmem:[%s208 + $0x38] sm:$0xff] %v383
      %s392 = smul.u32 2, %s19
      %p393 = scmp.lt.s32.totalorder %s18, 1
      %s394 = scalar_select %p393, %s18, 1
      %p395 = scmp.lt.s32.totalorder %s392, 1
      %s396 = scalar_select %p395, %s392, 1
      %s397 = smul.addr %s394, 8
      %s398 = sadd.s32 %s396, %s397
      %s399 = smul.addr %s398, 8
      %s400 = scalar_lea.vmem %s3, %s399
      // Predicated region
      $region33: #{pixel_shuffle_block.1} parent=31 // pred_check
        %p401 = pneg %p116
      $region34: #{pixel_shuffle_block.1} parent=31 // pred_check_branch
        %403 = sbr.rel (%p401) target = $region36
      $region35: #{pixel_shuffle_block.1} parent=31 // pred_region
        %s404 = smul.u32 2, %s19
      $region36: #{pixel_shuffle_block.1} parent=31 // pred_fallthru
        _
    $region32: #{pixel_shuffle_block.1} parent=5 // pred_fallthru
      _
    %p405 = scmp.le.s32.totalorder 2, %s9
    // Predicated region
    $region37: #{pixel_shuffle_block.1} parent=5 // pred_check
      %p406 = pneg %p405
    $region38: #{pixel_shuffle_block.1} parent=5 // pred_check_branch
      %408 = sbr.rel (%p406) target = $region40
    $region39: #{pixel_shuffle_block.1} parent=5 // pred_region
      %s409 = ssub.s32 %s9, 2
      // Predicated region
      $region41: #{pixel_shuffle_block.1} parent=39 // pred_check
        %p410 = pneg %p122
      $region42: #{pixel_shuffle_block.1} parent=39 // pred_check_branch
        %412 = sbr.rel (%p410) target = $region44
      $region43: #{pixel_shuffle_block.1} parent=39 // pred_region
        %s413 = smul.u32 2, %s21
        %p414 = scmp.lt.s32.totalorder %s20, 1
        %s415 = scalar_select %p414, %s20, 1
        %p416 = scmp.lt.s32.totalorder %s413, 1
        %s417 = scalar_select %p416, %s413, 1
        %s418 = smul.addr %s415, 8
        %s419 = sadd.s32 %s417, %s418
        %s420 = smul.addr %s419, 8
        %s421 = scalar_lea.vmem %s3, %s420
      $region44: #{pixel_shuffle_block.1} parent=39 // pred_fallthru
        _
    $region40: #{pixel_shuffle_block.1} parent=5 // pred_fallthru
      _
  $region6: #{pixel_shuffle_block.1} parent=0 // loop_footer
    %s13 = sadd.s32 1, %s9
  $region7: #{pixel_shuffle_block.1} parent=0 // loop_footer_branch
    %8 = sbr.rel target = $region3
  $region8: #{pixel_shuffle_block.1} parent=0 // loop_exit
    _

</llo_original>
